<compile_context>
chip_gen: v6e
topology: v6e:2x2x1
jax: 0.10.0
libtpu: 0.0.40
codegen_flags: <defaults>
</compile_context>

<pallas_src>
import math

import jax
import jax.numpy as jnp
import numpy as np
from jax.experimental import pallas as pl
from jax.experimental.pallas import tpu as pltpu


def _pattern_emb_kernel(xyz_ref, w_ref, b_ref, o_ref):
    """One batch element per grid step.

    xyz_ref: (N, 3)        points-major, channel-minor input slice
    w_ref:   (3, n_embd)   fused block-diagonal weight of fc1/fc2/fc3
    b_ref:   (1, n_embd)   fused bias
    o_ref:   (N, n_embd)   lane-dense output
    """
    o_ref[...] = (
        jnp.dot(xyz_ref[...], w_ref[...], preferred_element_type=jnp.float32)
        + b_ref[...]
    )


def pattern_emb_forward(xyz, params, n_embd, in_channels=3):
    """Pallas equivalent of pattern_emb.forward. xyz: (B, in_channels, N) f32."""
    B, Cin, N = xyz.shape
    assert Cin == in_channels == 3, "pattern_emb has exactly three fc branches"

    # --- Fuse the three Linear(1, k) layers into one (3, n_embd) matmul weight ---
    # Row c of W holds fc_{c+1}'s flattened weight on its own column slice, zeros
    # elsewhere; concatenating the per-branch outputs is then a single matmul.
    W = jnp.zeros((in_channels, n_embd), jnp.float32)
    b_parts = []
    off = 0
    for c in range(in_channels):
        wc = params[f"w{c + 1}"]          # (k_c,)
        bc = params[f"b{c + 1}"]          # (k_c,)
        k = wc.shape[0]
        W = W.at[c, off:off + k].set(wc)
        b_parts.append(bc)
        off += k
    assert off == n_embd
    bias = jnp.concatenate(b_parts)[None, :]          # (1, n_embd)

    # torch's xyz.transpose(1, 2): done at the XLA level (tiny layout op) so the
    # kernel dot uses standard contraction dims.
    xyz_t = jnp.transpose(xyz, (0, 2, 1)).astype(jnp.float32)   # (B, N, 3)

    return pl.pallas_call(
        _pattern_emb_kernel,
        out_shape=jax.ShapeDtypeStruct((B, N, n_embd), jnp.float32),
        grid=(B,),
        in_specs=[
            # None == pl.Squeezed(): batch dim squeezed out of the kernel ref.
            pl.BlockSpec((None, N, in_channels), lambda b: (b, 0, 0)),   # xyz_t
            pl.BlockSpec((in_channels, n_embd), lambda b: (0, 0)),       # fused W
            pl.BlockSpec((1, n_embd), lambda b: (0, 0)),                 # fused bias
        ],
        out_specs=pl.BlockSpec((None, N, n_embd), lambda b: (b, 0, 0)),
        compiler_params=pltpu.CompilerParams(dimension_semantics=("parallel",)),
    )(xyz_t, W, bias)


def _init_params(key, n_embd, in_channels=3):
    """Mimics torch.nn.Linear(1, k) default init: uniform(+/- 1/sqrt(in_features)=1)."""
    emb_every = n_embd // in_channels
    emb_rem = n_embd % in_channels
    sizes = [emb_every, emb_every, emb_every + emb_rem]   # fc1, fc2, fc3
    ks = jax.random.split(key, 2 * in_channels)
    params = {}
    for c, sz in enumerate(sizes):
        params[f"w{c + 1}"] = jax.random.uniform(ks[2 * c], (sz,), jnp.float32, -1.0, 1.0)
        params[f"b{c + 1}"] = jax.random.uniform(ks[2 * c + 1], (sz,), jnp.float32, -1.0, 1.0)
    return params


def _reference(xyz, params):
    """Pure-JAX mirror of the PyTorch forward, for correctness checking."""
    x = jnp.transpose(xyz, (0, 2, 1))                         # (B, N, 3)
    o1 = x[:, :, 0:1] * params["w1"][None, None, :] + params["b1"]
    o2 = x[:, :, 1:2] * params["w2"][None, None, :] + params["b2"]
    o3 = x[:, :, 2:3] * params["w3"][None, None, :] + params["b3"]
    return jnp.concatenate([o1, o2, o3], axis=-1)             # (B, N, n_embd)


if __name__ == "__main__":
    B, in_channels, N, n_embd = 2, 3, 16, 32

    key = jax.random.PRNGKey(0)
    kx, kw = jax.random.split(key)

    xyz = jax.random.normal(kx, (B, in_channels, N), dtype=jnp.float32)
    params = _init_params(kw, n_embd, in_channels)

    out = pattern_emb_forward(xyz, params, n_embd, in_channels)
    out = jax.block_until_ready(out)

    ref = _reference(xyz, params)
    np.testing.assert_allclose(np.asarray(out), np.asarray(ref), rtol=1e-5, atol=1e-5)

    print("KERNEL_OK")
</pallas_src>

<mosaic_0001>
module attributes {stable_mosaic.version = 11 : i64} {
  func.func @_pattern_emb_kernel(%arg0: i32, %arg1: memref<1x16x3xf32, #tpu.memory_space<vmem>>, %arg2: memref<3x32xf32, #tpu.memory_space<vmem>>, %arg3: memref<1x32xf32, #tpu.memory_space<vmem>>, %arg4: memref<1x16x32xf32, #tpu.memory_space<vmem>>) attributes {dimension_semantics = [#tpu.dimension_semantics<parallel>], iteration_bounds = array<i64: 2>, scalar_prefetch = 0 : i64, scratch_operands = 0 : i64, tpu.core_type = #tpu.core_type<tc>, window_params = [{transform_indices = @transform_0, window_bounds = array<i64: 1, 16, 3>}, {pipeline_mode = #tpu.pipeline_mode<synchronous>, transform_indices = @transform_1, window_bounds = array<i64: 3, 32>}, {pipeline_mode = #tpu.pipeline_mode<synchronous>, transform_indices = @transform_2, window_bounds = array<i64: 1, 32>}, {transform_indices = @transform_3, window_bounds = array<i64: 1, 16, 32>}]} {
    %c0 = arith.constant 0 : index
    %c0_0 = arith.constant 0 : index
    %c0_1 = arith.constant 0 : index
    %0 = vector.load %arg1[%c0, %c0_0, %c0_1] : memref<1x16x3xf32, #tpu.memory_space<vmem>>, vector<1x16x3xf32>
    %1 = vector.shape_cast %0 : vector<1x16x3xf32> to vector<16x3xf32>
    %c0_2 = arith.constant 0 : index
    %c0_3 = arith.constant 0 : index
    %2 = vector.load %arg2[%c0_2, %c0_3] : memref<3x32xf32, #tpu.memory_space<vmem>>, vector<3x32xf32>
    %cst = arith.constant dense<0.000000e+00> : vector<16x32xf32>
    %3 = tpu.matmul %1, %2, %cst {dimension_numbers = #tpu.dot_dimension_numbers<[1], [0], [0], [1], [0, 0, 1, 1], [], []>} : vector<16x3xf32>, vector<3x32xf32>, vector<16x32xf32> -> vector<16x32xf32>
    %c0_4 = arith.constant 0 : index
    %c0_5 = arith.constant 0 : index
    %4 = vector.load %arg3[%c0_4, %c0_5] : memref<1x32xf32, #tpu.memory_space<vmem>>, vector<1x32xf32>
    %5 = vector.broadcast %4 : vector<1x32xf32> to vector<16x32xf32>
    %6 = arith.addf %3, %5 : vector<16x32xf32>
    %c0_6 = arith.constant 0 : index
    %c0_7 = arith.constant 0 : index
    %c0_8 = arith.constant 0 : index
    %7 = vector.load %arg4[%c0_6, %c0_7, %c0_8] : memref<1x16x32xf32, #tpu.memory_space<vmem>>, vector<1x16x32xf32>
    %8 = vector.shape_cast %7 : vector<1x16x32xf32> to vector<16x32xf32>
    %9 = vector.shape_cast %6 : vector<16x32xf32> to vector<1x16x32xf32>
    tpu.vector_store %arg4[%c0_6, %c0_7, %c0_8], %9 {strides = array<i32>} : memref<1x16x32xf32, #tpu.memory_space<vmem>>, vector<1x16x32xf32>,
    return
  }
  func.func @transform_0(%arg0: i32) -> (i32, i32, i32) {
    %c0_i32 = arith.constant 0 : i32
    %c0_i32_0 = arith.constant 0 : i32
    %c0_i32_1 = arith.constant 0 : i32
    return %arg0, %c0_i32, %c0_i32_0 : i32, i32, i32
  }
  func.func @transform_1(%arg0: i32) -> (i32, i32) {
    %c0_i32 = arith.constant 0 : i32
    %c0_i32_0 = arith.constant 0 : i32
    %c0_i32_1 = arith.constant 0 : i32
    return %c0_i32, %c0_i32_0 : i32, i32
  }
  func.func @transform_2(%arg0: i32) -> (i32, i32) {
    %c0_i32 = arith.constant 0 : i32
    %c0_i32_0 = arith.constant 0 : i32
    %c0_i32_1 = arith.constant 0 : i32
    return %c0_i32, %c0_i32_0 : i32, i32
  }
  func.func @transform_3(%arg0: i32) -> (i32, i32, i32) {
    %c0_i32 = arith.constant 0 : i32
    %c0_i32_0 = arith.constant 0 : i32
    %c0_i32_1 = arith.constant 0 : i32
    return %arg0, %c0_i32, %c0_i32_0 : i32, i32, i32
  }
}

</mosaic_0001>

<llo_original>
// kernel: tpu_custom_call.1
$region0: #{tpu_custom_call.1}
  #allocation0 [shape = 'u32[]', space=smem, size = 0x4, offset = 0x4, fixed_abs, tag = 'smem constant byte address 0x4 - core index']
  #allocation1 [shape = 'u32[144,128]{1,0:T(1,128)}', space=vmem, size = 0x12000, scoped, tag = 'internal scratch']
  %s0 = inlined_call_operand.vmem [shape: f32[2,16,3], index: 0, kind: input, shape index: {}]
  %s1 = inlined_call_operand.vmem [shape: f32[3,32], index: 1, kind: input, shape index: {}]
  %s2 = inlined_call_operand.vmem [shape: f32[1,32], index: 2, kind: input, shape index: {}]
  %s3 = inlined_call_operand.hbm [shape: f32[2,16,32], index: 3, kind: output, shape index: {}]
  %s4 = sld [smem:[#allocation0]]
  $region45: #{tpu_custom_call.1} parent=0
    _
  %s6 = ssub.s32 1, %s4
  %s7 = scalar_select 0, %s6, %s4
  $region1: #{tpu_custom_call.1} parent=0
    #allocation2 [shape = 'u8[16384]{0}', space=vmem, size = 0x4000, scoped, tag = 'output window, operand 0']
    #allocation3 [shape = 's32[2]{0}', space=sflag, size = 0x8, scoped, tag = 'scoped memory for tpu_custom_call.1']
    %8 = vsyncpa [#allocation3], 0
    %s9 = scalar_lea.sflag [#allocation3], 1
    %10 = vsyncpa %s9, 0
    loop: start=0, step=1, limit=4
    $region2: #{tpu_custom_call.1} parent=1 // loop_pre_header
      _
    $region3: #{tpu_custom_call.1} parent=1 // loop_header
      %s12 = sphi 0, %s16
      %p13 = scmp.ge.s32.totalorder %s12, 4
      %s22 = sphi 0, %s24
      %s25 = sphi 0, %s22
      %s26 = sphi 0, %s25
      %s42 = sphi 0, %s26
      %s46 = sphi 0, %s46
      %s48 = sphi 0, %s46
      %s49 = sphi 0, %s48
      %s63 = sphi 0, %s49
      %s67 = sphi 0, %s67
      %s69 = sphi 0, %s67
      %s70 = sphi 0, %s69
      %s84 = sphi 0, %s70
      %s90 = sphi 0, %s92
      %s93 = sphi 0, %s90
      %s94 = sphi 0, %s93
      %s110 = sphi 0, %s94
    $region4: #{tpu_custom_call.1} parent=1 // loop_header_branch
      %15 = sbr.rel (%p13) target = $region8
    $region5: #{tpu_custom_call.1} parent=1 // loop_body
      %s17 = ssub.s32 %s12, 1
      %s18 = ssub.s32 %s12, 2
      %s19 = sadd.s32 %s12, 1
      %s20 = ssub.s32 %s12, %s19
      %p21 = scmp.eq.s32.totalorder %s20, 0
      %s23 = sadd.s32 %s22, 1
      %s24 = scalar_select %p21, %s22, %s23
      %p27 = pneg %p21
      %p28 = scmp.eq.s32.totalorder %s12, 1
      %p29 = por %p27, %p28
      %p30 = scmp.ne.s32.totalorder %s22, %s25
      %p31 = scmp.eq.s32.totalorder %s12, 0
      %p32 = por %p30, %p31
      %p33 = scmp.ne.s32.totalorder %s22, %s25
      %p34 = scmp.eq.s32.totalorder %s17, 1
      %p35 = por %p33, %p34
      %p36 = scmp.ne.s32.totalorder %s25, %s26
      %p37 = scmp.eq.s32.totalorder %s17, 0
      %p38 = por %p36, %p37
      %p39 = scmp.ne.s32.totalorder %s25, %s26
      %p40 = scmp.eq.s32.totalorder %s18, 1
      %p41 = por %p39, %p40
      %p43 = scmp.ne.s32.totalorder %s26, %s42
      %p44 = scmp.eq.s32.totalorder %s18, 0
      %p45 = por %p43, %p44
      %s47 = sadd.s32 %s46, 1
      %p50 = scmp.eq.s32.totalorder %s12, 1
      %p51 = scmp.ne.s32.totalorder %s46, %s48
      %p52 = scmp.eq.s32.totalorder %s12, 0
      %p53 = por %p51, %p52
      %p54 = scmp.ne.s32.totalorder %s46, %s48
      %p55 = scmp.eq.s32.totalorder %s17, 1
      %p56 = por %p54, %p55
      %p57 = scmp.ne.s32.totalorder %s48, %s49
      %p58 = scmp.eq.s32.totalorder %s17, 0
      %p59 = por %p57, %p58
      %p60 = scmp.ne.s32.totalorder %s48, %s49
      %p61 = scmp.eq.s32.totalorder %s18, 1
      %p62 = por %p60, %p61
      %p64 = scmp.ne.s32.totalorder %s49, %s63
      %p65 = scmp.eq.s32.totalorder %s18, 0
      %p66 = por %p64, %p65
      %s68 = sadd.s32 %s67, 1
      %p71 = scmp.eq.s32.totalorder %s12, 1
      %p72 = scmp.ne.s32.totalorder %s67, %s69
      %p73 = scmp.eq.s32.totalorder %s12, 0
      %p74 = por %p72, %p73
      %p75 = scmp.ne.s32.totalorder %s67, %s69
      %p76 = scmp.eq.s32.totalorder %s17, 1
      %p77 = por %p75, %p76
      %p78 = scmp.ne.s32.totalorder %s69, %s70
      %p79 = scmp.eq.s32.totalorder %s17, 0
      %p80 = por %p78, %p79
      %p81 = scmp.ne.s32.totalorder %s69, %s70
      %p82 = scmp.eq.s32.totalorder %s18, 1
      %p83 = por %p81, %p82
      %p85 = scmp.ne.s32.totalorder %s70, %s84
      %p86 = scmp.eq.s32.totalorder %s18, 0
      %p87 = por %p85, %p86
      %s88 = ssub.s32 %s12, %s19
      %p89 = scmp.eq.s32.totalorder %s88, 0
      %s91 = sadd.s32 %s90, 1
      %s92 = scalar_select %p89, %s90, %s91
      %p95 = pneg %p89
      %p96 = scmp.eq.s32.totalorder %s12, 1
      %p97 = por %p95, %p96
      %p98 = scmp.ne.s32.totalorder %s90, %s93
      %p99 = scmp.eq.s32.totalorder %s12, 0
      %p100 = por %p98, %p99
      %p101 = scmp.ne.s32.totalorder %s90, %s93
      %p102 = scmp.eq.s32.totalorder %s17, 1
      %p103 = por %p101, %p102
      %p104 = scmp.ne.s32.totalorder %s93, %s94
      %p105 = scmp.eq.s32.totalorder %s17, 0
      %p106 = por %p104, %p105
      %p107 = scmp.ne.s32.totalorder %s93, %s94
      %p108 = scmp.eq.s32.totalorder %s18, 1
      %p109 = por %p107, %p108
      %p111 = scmp.ne.s32.totalorder %s94, %s110
      %p112 = scmp.eq.s32.totalorder %s18, 0
      %p113 = por %p111, %p112
      %p114 = scmp.le.s32.totalorder 1, %s12
      %p115 = scmp.lt.s32.totalorder %s12, 3
      %p116 = pnand %p114, %p115
      %p117 = pneg %p116
      // Predicated region
      $region9: #{tpu_custom_call.1} parent=5 // pred_check
        _
      $region10: #{tpu_custom_call.1} parent=5 // pred_check_branch
        %119 = sbr.rel (%p116) target = $region12
      $region11: #{tpu_custom_call.1} parent=5 // pred_region
        %s120 = ssub.s32 %s12, 1
        // Predicated region
        $region13: #{tpu_custom_call.1} parent=11 // pred_check
          %p121 = pneg %p59
        $region14: #{tpu_custom_call.1} parent=11 // pred_check_branch
          %123 = sbr.rel (%p121) target = $region16
        $region15: #{tpu_custom_call.1} parent=11 // pred_region
          _
        $region16: #{tpu_custom_call.1} parent=11 // pred_fallthru
          _
        // Predicated region
        $region17: #{tpu_custom_call.1} parent=11 // pred_check
          %p124 = pneg %p80
        $region18: #{tpu_custom_call.1} parent=11 // pred_check_branch
          %126 = sbr.rel (%p124) target = $region20
        $region19: #{tpu_custom_call.1} parent=11 // pred_region
          _
        $region20: #{tpu_custom_call.1} parent=11 // pred_fallthru
          _
      $region12: #{tpu_custom_call.1} parent=5 // pred_fallthru
        _
      %p127 = scmp.lt.s32.totalorder %s12, 2
      // Predicated region
      $region21: #{tpu_custom_call.1} parent=5 // pred_check
        %p128 = pneg %p127
      $region22: #{tpu_custom_call.1} parent=5 // pred_check_branch
        %130 = sbr.rel (%p128) target = $region24
      $region23: #{tpu_custom_call.1} parent=5 // pred_region
        // Predicated region
        $region25: #{tpu_custom_call.1} parent=23 // pred_check
          %p131 = pneg %p32
        $region26: #{tpu_custom_call.1} parent=23 // pred_check_branch
          %133 = sbr.rel (%p131) target = $region28
        $region27: #{tpu_custom_call.1} parent=23 // pred_region
          %p134 = scmp.lt.s32.totalorder %s12, 1
          %s135 = scalar_select %p134, %s12, 1
          %s136 = smul.addr %s135, 2
          %s137 = smul.addr %s136, 8
          %s138 = scalar_lea.vmem %s0, %s137
        $region28: #{tpu_custom_call.1} parent=23 // pred_fallthru
          _
      $region24: #{tpu_custom_call.1} parent=5 // pred_fallthru
        _
      %p139 = scmp.le.s32.totalorder 1, %s12
      %p140 = scmp.lt.s32.totalorder %s12, 3
      %p141 = pnand %p139, %p140
      %p142 = pneg %p141
      // Predicated region
      $region29: #{tpu_custom_call.1} parent=5 // pred_check
        _
      $region30: #{tpu_custom_call.1} parent=5 // pred_check_branch
        %144 = sbr.rel (%p141) target = $region32
      $region31: #{tpu_custom_call.1} parent=5 // pred_region
        %s145 = ssub.s32 %s12, 1
        %p146 = scmp.lt.s32.totalorder %s17, 1
        %s147 = scalar_select %p146, %s17, 1
        %s148 = smul.addr %s147, 2
        %s149 = smul.addr %s148, 8
        %s150 = scalar_lea.vmem %s0, %s149
        %p151 = pneg %p38
        %p152 = pneg %p35
        %p153 = pneg %p59
        %p154 = pneg %p56
        %p155 = pneg %p80
        %p156 = pneg %p77
        %p157 = pneg %p106
        %p158 = pneg %p103
        %s159 = sand.u32 %s93, 1
        %s160 = scalar_lea.sflag [#allocation3], %s159
        %s161 = sand.u32 %s93, 1
        %s162 = smul.addr %s161, 16
        %s163 = scalar_lea.vmem [#allocation2], %s162
        %p164 = scmp.lt.s32.totalorder %s17, 1
        %s165 = scalar_select %p164, %s17, 1
        %s166 = smul.addr %s165, 2
        %s167 = smul.addr %s166, 8
        %s168 = scalar_lea.vmem %s0, %s167
        %v169 = vld [vmem:[%s168] sm:$0xff]
        %v170 = vld [vmem:[%s168 + $0x8] sm:$0xff]
        %v171 = vld [vmem:[%s1] sm:$0x7]
        %v172 = vld [vmem:[%s2] sm:$0x1]
        %v174 = vlaneseq
        %v175 = vshrl.u32 %v174, 7
        %v176 = vsub.s32 0, %v175
        %v177 = vrot.slane %v172, %v176
        %vm179 = vcmask 23552
        %v181 = vsel %vm179, %v169, 0
        %v184 = vsel %vm179, %v170, 0
        %vm186 = vcmask 1042432
        %v188 = vsel %vm186, %v171, 0
        %190 = vmatprep.subr.mxu0 0.0
        %191 = vmatpush1.msra.mxu0 0.0
        %192 = vmatprep.subr.mxu0 0.0
        %193 = vmatpush1.msra.mxu0 0.0
        %194 = vmatprep.subr.mxu0 0.0
        %195 = vmatpush1.msra.mxu0 0.0
        %196 = vmatprep.subr.mxu0 0.0
        %197 = vmatpush1.msra.mxu0 0.0
        %198 = vmatprep.subr.mxu0 0.0
        %199 = vmatpush1.msra.mxu0 0.0
        %200 = vmatprep.subr.mxu0 0.0
        %201 = vmatpush1.msra.mxu0 0.0
        %202 = vmatprep.subr.mxu0 0.0
        %203 = vmatpush1.msra.mxu0 0.0
        %204 = vmatprep.subr.mxu0 0.0
        %205 = vmatpush1.msra.mxu0 0.0
        %206 = vmatprep.subr.mxu0 0.0
        %207 = vmatpush1.msra.mxu0 0.0
        %208 = vmatprep.subr.mxu0 0.0
        %209 = vmatpush1.msra.mxu0 0.0
        %210 = vmatprep.subr.mxu0 0.0
        %211 = vmatpush1.msra.mxu0 0.0
        %212 = vmatprep.subr.mxu0 0.0
        %213 = vmatpush1.msra.mxu0 0.0
        %214 = vmatprep.subr.mxu0 0.0
        %215 = vmatpush1.msra.mxu0 0.0
        %216 = vmatprep.subr.mxu0 0.0
        %217 = vmatpush1.msra.mxu0 0.0
        %218 = vmatprep.subr.mxu0 0.0
        %219 = vmatpush1.msra.mxu0 0.0
        %220 = vmatprep.subr.mxu0 0.0
        %221 = vmatpush1.msra.mxu0 %v188
        %222 = vmatprep.subr.mxu0 0.0
        %223 = vmatpush2.msra.mxu0 0.0
        %224 = vmatprep.subr.mxu0 0.0
        %225 = vmatpush2.msra.mxu0 0.0
        %226 = vmatprep.subr.mxu0 0.0
        %227 = vmatpush2.msra.mxu0 0.0
        %228 = vmatprep.subr.mxu0 0.0
        %229 = vmatpush2.msra.mxu0 0.0
        %230 = vmatprep.subr.mxu0 0.0
        %231 = vmatpush2.msra.mxu0 0.0
        %232 = vmatprep.subr.mxu0 0.0
        %233 = vmatpush2.msra.mxu0 0.0
        %234 = vmatprep.subr.mxu0 0.0
        %235 = vmatpush2.msra.mxu0 0.0
        %236 = vmatprep.subr.mxu0 0.0
        %237 = vmatpush2.msra.mxu0 0.0
        %238 = vmatprep.subr.mxu0 0.0
        %239 = vmatpush2.msra.mxu0 0.0
        %240 = vmatprep.subr.mxu0 0.0
        %241 = vmatpush2.msra.mxu0 0.0
        %242 = vmatprep.subr.mxu0 0.0
        %243 = vmatpush2.msra.mxu0 0.0
        %244 = vmatprep.subr.mxu0 0.0
        %245 = vmatpush2.msra.mxu0 0.0
        %246 = vmatprep.subr.mxu0 0.0
        %247 = vmatpush2.msra.mxu0 0.0
        %248 = vmatprep.subr.mxu0 0.0
        %249 = vmatpush2.msra.mxu0 0.0
        %250 = vmatprep.subr.mxu0 0.0
        %251 = vmatpush2.msra.mxu0 0.0
        %252 = vmatprep.subr.mxu0 0.0
        %253 = vmatpush2.msra.mxu0 0.0
        %254 = vmatprep.mubr.f32.mxu0 0.0
        %255 = vmatmul.mubr.f32.gmra.mxu0 %v181
        %v256 = vpop.f32.mrf.mxu0
        %v257 = vadd.f32 %v177, %v256
        %v258 = vpop.f32.mrf.mxu0
        %259 = vmatprep.mubr.f32.mxu0 0.0
        %260 = vmatmul.mubr.f32.gmra.mxu0 %v184
        %v261 = vpop.f32.mrf.mxu0
        %v262 = vadd.f32 %v177, %v261
        %v263 = vpop.f32.mrf.mxu0
        %264 = vdwg.mxu0
        %vm265 = vcmask 261120
        %266 = vst.msk [vmem:[%s163] sm:$0xff] %vm265, %v257
        %267 = vst.msk [vmem:[%s163 + $0x8] sm:$0xff] %vm265, %v262
        %s268 = sand.u32 %s93, 1
        %s269 = scalar_lea.sflag [#allocation3], %s268
        %s270 = sand.u32 %s93, 1
        %s271 = smul.addr %s270, 16
        %s272 = scalar_lea.vmem [#allocation2], %s271
        // Predicated region
        $region33: #{tpu_custom_call.1} parent=31 // pred_check
          %p273 = pneg %p103
        $region34: #{tpu_custom_call.1} parent=31 // pred_check_branch
          %275 = sbr.rel (%p273) target = $region36
        $region35: #{tpu_custom_call.1} parent=31 // pred_region
          %s277 = ssub.s32 256, 256
          %278 = vsyncadd %s269, %s277
          %s279 = smul.addr %s17, 2
          %s280 = smul.addr %s279, 128
          %s281 = scalar_lea.hbm %s3, %s280
          %s282 = sshll.u32 %s272, 4
          %s283 = int_to_ptr.vmem [resolvable:$true] %s282
          %288 = dma.vmem_to_hbm [thread:$0]  %s283, 256, %s281, %s269, 128, 128, 8
        $region36: #{tpu_custom_call.1} parent=31 // pred_fallthru
          _
      $region32: #{tpu_custom_call.1} parent=5 // pred_fallthru
        _
      %p289 = scmp.le.s32.totalorder 2, %s12
      // Predicated region
      $region37: #{tpu_custom_call.1} parent=5 // pred_check
        %p290 = pneg %p289
      $region38: #{tpu_custom_call.1} parent=5 // pred_check_branch
        %292 = sbr.rel (%p290) target = $region40
      $region39: #{tpu_custom_call.1} parent=5 // pred_region
        %s293 = ssub.s32 %s12, 2
        // Predicated region
        $region41: #{tpu_custom_call.1} parent=39 // pred_check
          %p294 = pneg %p109
        $region42: #{tpu_custom_call.1} parent=39 // pred_check_branch
          %296 = sbr.rel (%p294) target = $region44
        $region43: #{tpu_custom_call.1} parent=39 // pred_region
          %s297 = sand.u32 %s94, 1
          %s298 = scalar_lea.sflag [#allocation3], %s297
          %s299 = sand.u32 %s94, 1
          %s300 = smul.addr %s299, 16
          %s301 = scalar_lea.vmem [#allocation2], %s300
          %302 = dma.done %s298, 256
        $region44: #{tpu_custom_call.1} parent=39 // pred_fallthru
          _
      $region40: #{tpu_custom_call.1} parent=5 // pred_fallthru
        _
    $region6: #{tpu_custom_call.1} parent=1 // loop_footer
      %s16 = sadd.s32 1, %s12
    $region7: #{tpu_custom_call.1} parent=1 // loop_footer_branch
      %11 = sbr.rel target = $region3
    $region8: #{tpu_custom_call.1} parent=1 // loop_exit
      _
    %303 = vsyncpa [#allocation3], 1
    %s304 = scalar_lea.sflag [#allocation3], 1
    %305 = vsyncpa %s304, 1

</llo_original>
